<compile_context>
chip_gen: v6e
topology: v6e:2x2x1
jax: 0.10.0
libtpu: 0.0.40
codegen_flags: <defaults>
</compile_context>

<pallas_src>
import numpy as np
from functools import partial

import jax
import jax.numpy as jnp
from jax.experimental import pallas as pl
from jax.experimental.pallas import tpu as pltpu

_EPS = 1e-12


# ---------------------------------------------------------------------------
# Pallas kernel: fused per-view augment (2 views, one call, no grid)
# ---------------------------------------------------------------------------
def _mnn_aug_kernel(prm_ref, xxp_ref, o1_ref, o2_ref):
    """prm_ref : SMEM (6,) f32  = [c0, lam0, g0, c1, lam1, g1]
       xxp_ref : VMEM (4, F)    = [x_view1; x_view2; xp_view1; xp_view2]
       o1_ref/o2_ref : VMEM (1, F) outputs (augmented view 1 / view 2)."""
    out_refs = (o1_ref, o2_ref)
    for r in range(2):                           # static unroll: 2 views
        c = prm_ref[3 * r + 0]                   # linear-blend coefficient
        lam = prm_ref[3 * r + 1]                 # geometric exponent
        g = prm_ref[3 * r + 2]                   # 1.0 -> geometric path
        x = xxp_ref[r:r + 1, :]                  # (1, F)
        xp = xxp_ref[2 + r:3 + r, :]             # (1, F)
        o = out_refs[r]

        # 'int' / 'exc' / passthrough folded into one lerp: x_p + c*(x - x_p)
        o[...] = xp + c * (x - xp)

        # 'geo': x**lam * x_p**(1-lam); EUP-heavy ops gated so they run only
        # when this view actually sampled the geometric op.
        @pl.when(g > 0.5)
        def _():
            lx = jnp.log(jnp.maximum(x, _EPS))
            lxp = jnp.log(jnp.maximum(xp, _EPS))
            geo = jnp.exp(lam * lx + (1.0 - lam) * lxp)
            geo = jnp.where(x <= 0.0, 0.0, geo)                    # 0**lam = 0 (lam > 0)
            geo = jnp.where((xp <= 0.0) & (lam < 1.0), 0.0, geo)   # 0**(1-lam); 0**0 = 1
            o[...] = geo


def mnn_augment_pair(params, xxp):
    """params: (6,) f32 SMEM scalars; xxp: (4, F) f32 -> (o1, o2) each (1, F)."""
    F = xxp.shape[-1]
    return pl.pallas_call(
        _mnn_aug_kernel,
        in_specs=[pl.BlockSpec(memory_space=pltpu.MemorySpace.SMEM),
                  pl.BlockSpec(memory_space=pltpu.MemorySpace.VMEM)],
        out_specs=(pl.BlockSpec(memory_space=pltpu.MemorySpace.VMEM),
                   pl.BlockSpec(memory_space=pltpu.MemorySpace.VMEM)),
        out_shape=(jax.ShapeDtypeStruct((1, F), xxp.dtype),
                   jax.ShapeDtypeStruct((1, F), xxp.dtype)),
    )(params, xxp)


# ---------------------------------------------------------------------------
# Device-side forward: sampling + gathers + kernel, all under one jit
# ---------------------------------------------------------------------------
@partial(jax.jit, static_argnames=("alpha", "apply_thresh", "n_ops"))
def _mnn_forward(view_1, view_2, cell_id, key,
                 X, nns_pad, nns_len, mnn_pad, mnn_len, op_kinds,
                 *, alpha, apply_thresh, n_ops):
    ks = jax.random.split(key, 4)
    apply = jax.random.uniform(ks[0], ()) < apply_thresh

    # -- intra partner for view 1; mirrors the module: the sampled *position*
    #    is used directly as the dataset row index (x_n = X[n_intra]).
    n_len = nns_len[cell_id]
    pos = jax.random.randint(ks[1], (), 0, jnp.maximum(n_len, 1))
    n_intra = jnp.where(n_len > 0, pos, cell_id)
    x1n = X[n_intra][None, :]

    # -- inter operands for view 2 (anchor row and its sampled neighbour row)
    k_a, k_n = jax.random.split(ks[2])
    m_len = mnn_len[cell_id]
    a_pos = jax.random.randint(k_a, (), 0, jnp.maximum(m_len, 1))
    anchor = jnp.where(m_len > 0, mnn_pad[cell_id, a_pos], cell_id)
    n2_len = nns_len[anchor]
    p2 = jax.random.randint(k_n, (), 0, jnp.maximum(n2_len, 1))
    n_inter = jnp.where(n2_len > 0, nns_pad[anchor, p2], anchor)
    x2p = X[anchor][None, :]
    x2pn = X[n_inter][None, :]

    # -- per-view augment-op parameters (c, lam, g)
    def aug_params(k):
        if n_ops == 0:                                     # no ops configured
            return jnp.float32(1.0), jnp.float32(1.0), jnp.float32(0.0)
        k_op, k_lam, k_b = jax.random.split(k, 3)
        kind = op_kinds[jax.random.randint(k_op, (), 0, n_ops)]
        bern = jax.random.bernoulli(k_b, alpha).astype(jnp.float32)   # one coin per row ('exc')
        lam = (alpha - 1.0) * jax.random.uniform(k_lam, ()) + 1.0     # lam in (alpha, 1]
        c = jnp.where(kind == 0, alpha, jnp.where(kind == 2, bern, 1.0))
        lam = jnp.where(kind == 1, lam, 1.0)
        g = (kind == 1).astype(jnp.float32)
        return c.astype(jnp.float32), lam.astype(jnp.float32), g

    k_p1, k_p2 = jax.random.split(ks[3])
    c1, l1, g1 = aug_params(k_p1)
    c2, l2, g2 = aug_params(k_p2)

    # -- fold the apply-probability coin into the params: c=1, g=0 -> out = x
    one, zero = jnp.float32(1.0), jnp.float32(0.0)
    c1 = jnp.where(apply, c1, one); g1 = jnp.where(apply, g1, zero)
    c2 = jnp.where(apply, c2, one); g2 = jnp.where(apply, g2, zero)
    x2 = jnp.where(apply, x2p, view_2)        # inter path augments the anchor row

    xxp = jnp.concatenate([view_1, x2, x1n, x2pn], axis=0)              # (4, F)
    params = jnp.stack([c1, l1, g1, c2, l2, g2]).astype(jnp.float32)    # (6,)
    return mnn_augment_pair(params, xxp)


# ---------------------------------------------------------------------------
# Module-equivalent wrapper
# ---------------------------------------------------------------------------
class MnnAugment:
    _OP_CODE = {'int': 0, 'geo': 1, 'exc': 2}

    def __init__(self, X, mnn_dict, nns, alpha, augment_set,
                 apply_prob=0.9, nsize=1, **kwargs):
        X = np.asarray(X, dtype=np.float32)            # stands in for X.toarray()
        self.X = jnp.asarray(X)
        n_rows = X.shape[0]
        self.alpha = float(alpha)
        self.apply_thresh = float(apply_prob)
        self.nsize = int(nsize)
        # TODO(synk): nsize > 1 (multi-neighbour broadcast output) and multi-cell
        # batching per call are not implemented; the module's forward uses one
        # cell and nsize=1.

        def _pad(d):
            d = {int(k): np.asarray(v, dtype=np.int32).reshape(-1) for k, v in d.items()}
            width = max([len(v) for v in d.values()] + [1])
            idx = np.zeros((n_rows, width), np.int32)
            ln = np.zeros((n_rows,), np.int32)
            for k, v in d.items():
                if 0 <= k < n_rows and len(v):
                    idx[k, :len(v)] = v
                    ln[k] = len(v)
            return jnp.asarray(idx), jnp.asarray(ln)

        # variable-length neighbour dicts -> padded device lookup tables
        self.nns_pad, self.nns_len = _pad(nns)
        self.mnn_pad, self.mnn_len = _pad(mnn_dict)

        kinds = [self._OP_CODE[a] for a in augment_set if a in self._OP_CODE]
        self.n_ops = len(kinds)
        self.op_kinds = jnp.asarray(kinds if kinds else [0], dtype=jnp.int32)

    def __call__(self, batch, key):
        view_1 = jnp.asarray(batch['x1'], jnp.float32)
        view_2 = jnp.asarray(batch['x2'], jnp.float32)
        cell_ids = batch['cell_ids']
        cell_id = jnp.asarray(cell_ids).reshape(-1)[0].astype(jnp.int32)
        o1, o2 = _mnn_forward(view_1, view_2, cell_id, key,
                              self.X, self.nns_pad, self.nns_len,
                              self.mnn_pad, self.mnn_len, self.op_kinds,
                              alpha=self.alpha, apply_thresh=self.apply_thresh,
                              n_ops=self.n_ops)
        return {'x1': o1, 'x2': o2, 'cell_ids': cell_ids}


# ---------------------------------------------------------------------------
if __name__ == "__main__":
    root = jax.random.PRNGKey(0)
    k_X, k_run = jax.random.split(root)

    N, F = 32, 256                                     # small, TPU-lane-friendly
    # stands in for X.toarray(): non-negative expression-like values
    X = jax.random.uniform(k_X, (N, F), dtype=jnp.float32, minval=0.1, maxval=5.0)

    rng = np.random.RandomState(0)
    nns = {i: rng.choice(N, size=4, replace=False) for i in range(N)}
    mnn_dict = {i: rng.choice(N, size=3, replace=False) for i in range(N)}

    cell_id = 7
    x1 = X[cell_id][None, :]                           # (1, F)
    x2 = X[(cell_id + 1) % N][None, :]                 # (1, F)
    cell_ids = jnp.asarray([cell_id], dtype=jnp.int32)

    aug = MnnAugment(np.asarray(X), mnn_dict, nns, alpha=0.5,
                     augment_set=['int', 'geo', 'exc'],
                     apply_prob=0.9, nsize=1)
    out = aug({'x1': x1, 'x2': x2, 'cell_ids': cell_ids}, k_run)
    jax.block_until_ready(out['x1'])
    jax.block_until_ready(out['x2'])

    # sanity: output shapes/dtypes match inputs and values are finite
    assert out['x1'].shape == x1.shape and out['x1'].dtype == x1.dtype
    assert out['x2'].shape == x2.shape and out['x2'].dtype == x2.dtype
    assert bool(jnp.all(jnp.isfinite(out['x1']))) and bool(jnp.all(jnp.isfinite(out['x2'])))

    print("KERNEL_OK")
</pallas_src>

<mosaic_0001>
module attributes {stable_mosaic.version = 11 : i64} {
  func.func @_mnn_aug_kernel(%arg0: memref<6xf32, #tpu.memory_space<smem>>, %arg1: memref<4x256xf32, #tpu.memory_space<vmem>>, %arg2: memref<1x256xf32, #tpu.memory_space<vmem>>, %arg3: memref<1x256xf32, #tpu.memory_space<vmem>>) attributes {dimension_semantics = [], scalar_prefetch = 0 : i64, scratch_operands = 0 : i64, tpu.core_type = #tpu.core_type<tc>} {
    %c0 = arith.constant 0 : index
    %0 = memref.load %arg0[%c0] : memref<6xf32, #tpu.memory_space<smem>>
    %c1 = arith.constant 1 : index
    %1 = memref.load %arg0[%c1] : memref<6xf32, #tpu.memory_space<smem>>
    %c2 = arith.constant 2 : index
    %2 = memref.load %arg0[%c2] : memref<6xf32, #tpu.memory_space<smem>>
    %c0_0 = arith.constant 0 : index
    %c0_1 = arith.constant 0 : index
    %3 = vector.load %arg1[%c0_0, %c0_1] : memref<4x256xf32, #tpu.memory_space<vmem>>, vector<1x256xf32>
    %c2_2 = arith.constant 2 : index
    %c0_3 = arith.constant 0 : index
    %4 = vector.load %arg1[%c2_2, %c0_3] : memref<4x256xf32, #tpu.memory_space<vmem>>, vector<1x256xf32>
    %5 = arith.subf %3, %4 : vector<1x256xf32>
    %6 = vector.broadcast %0 : f32 to vector<1x256xf32>
    %7 = arith.mulf %6, %5 : vector<1x256xf32>
    %8 = arith.addf %4, %7 : vector<1x256xf32>
    %c0_4 = arith.constant 0 : index
    %c0_5 = arith.constant 0 : index
    %9 = vector.load %arg2[%c0_4, %c0_5] : memref<1x256xf32, #tpu.memory_space<vmem>>, vector<1x256xf32>
    tpu.vector_store %arg2[%c0_4, %c0_5], %8 {strides = array<i32>} : memref<1x256xf32, #tpu.memory_space<vmem>>, vector<1x256xf32>,
    %cst = arith.constant 5.000000e-01 : f32
    %10 = arith.cmpf ogt, %2, %cst : f32
    %11 = arith.extui %10 : i1 to i32
    %c0_i32 = arith.constant 0 : i32
    %12 = arith.cmpi ne, %11, %c0_i32 : i32
    scf.if %12 {
      %cst_14 = arith.constant 9.99999996E-13 : f32
      %26 = vector.broadcast %cst_14 : f32 to vector<1x256xf32>
      %27 = arith.maximumf %3, %26 : vector<1x256xf32>
      %28 = math.log %27 : vector<1x256xf32>
      %cst_15 = arith.constant 9.99999996E-13 : f32
      %29 = vector.broadcast %cst_15 : f32 to vector<1x256xf32>
      %30 = arith.maximumf %4, %29 : vector<1x256xf32>
      %31 = math.log %30 : vector<1x256xf32>
      %32 = vector.broadcast %1 : f32 to vector<1x256xf32>
      %33 = arith.mulf %32, %28 : vector<1x256xf32>
      %cst_16 = arith.constant 1.000000e+00 : f32
      %34 = arith.subf %cst_16, %1 : f32
      %35 = vector.broadcast %34 : f32 to vector<1x256xf32>
      %36 = arith.mulf %35, %31 : vector<1x256xf32>
      %37 = arith.addf %33, %36 : vector<1x256xf32>
      %38 = math.exp %37 : vector<1x256xf32>
      %cst_17 = arith.constant 0.000000e+00 : f32
      %39 = vector.broadcast %cst_17 : f32 to vector<1x256xf32>
      %40 = arith.cmpf ole, %3, %39 : vector<1x256xf32>
      %cst_18 = arith.constant 0.000000e+00 : f32
      %41 = vector.broadcast %cst_18 : f32 to vector<1x256xf32>
      %42 = arith.select %40, %41, %38 : vector<1x256xi1>, vector<1x256xf32>
      %cst_19 = arith.constant 0.000000e+00 : f32
      %43 = vector.broadcast %cst_19 : f32 to vector<1x256xf32>
      %44 = arith.cmpf ole, %4, %43 : vector<1x256xf32>
      %cst_20 = arith.constant 1.000000e+00 : f32
      %45 = arith.cmpf olt, %1, %cst_20 : f32
      %46 = vector.broadcast %45 : i1 to vector<1x256xi1>
      %47 = arith.andi %44, %46 : vector<1x256xi1>
      %cst_21 = arith.constant 0.000000e+00 : f32
      %48 = vector.broadcast %cst_21 : f32 to vector<1x256xf32>
      %49 = arith.select %47, %48, %42 : vector<1x256xi1>, vector<1x256xf32>
      %c0_22 = arith.constant 0 : index
      %c0_23 = arith.constant 0 : index
      %50 = vector.load %arg2[%c0_22, %c0_23] : memref<1x256xf32, #tpu.memory_space<vmem>>, vector<1x256xf32>
      tpu.vector_store %arg2[%c0_22, %c0_23], %49 {strides = array<i32>} : memref<1x256xf32, #tpu.memory_space<vmem>>, vector<1x256xf32>,
    } else {
    }
    %c3 = arith.constant 3 : index
    %13 = memref.load %arg0[%c3] : memref<6xf32, #tpu.memory_space<smem>>
    %c4 = arith.constant 4 : index
    %14 = memref.load %arg0[%c4] : memref<6xf32, #tpu.memory_space<smem>>
    %c5 = arith.constant 5 : index
    %15 = memref.load %arg0[%c5] : memref<6xf32, #tpu.memory_space<smem>>
    %c1_6 = arith.constant 1 : index
    %c0_7 = arith.constant 0 : index
    %16 = vector.load %arg1[%c1_6, %c0_7] : memref<4x256xf32, #tpu.memory_space<vmem>>, vector<1x256xf32>
    %c3_8 = arith.constant 3 : index
    %c0_9 = arith.constant 0 : index
    %17 = vector.load %arg1[%c3_8, %c0_9] : memref<4x256xf32, #tpu.memory_space<vmem>>, vector<1x256xf32>
    %18 = arith.subf %16, %17 : vector<1x256xf32>
    %19 = vector.broadcast %13 : f32 to vector<1x256xf32>
    %20 = arith.mulf %19, %18 : vector<1x256xf32>
    %21 = arith.addf %17, %20 : vector<1x256xf32>
    %c0_10 = arith.constant 0 : index
    %c0_11 = arith.constant 0 : index
    %22 = vector.load %arg3[%c0_10, %c0_11] : memref<1x256xf32, #tpu.memory_space<vmem>>, vector<1x256xf32>
    tpu.vector_store %arg3[%c0_10, %c0_11], %21 {strides = array<i32>} : memref<1x256xf32, #tpu.memory_space<vmem>>, vector<1x256xf32>,
    %cst_12 = arith.constant 5.000000e-01 : f32
    %23 = arith.cmpf ogt, %15, %cst_12 : f32
    %24 = arith.extui %23 : i1 to i32
    %c0_i32_13 = arith.constant 0 : i32
    %25 = arith.cmpi ne, %24, %c0_i32_13 : i32
    scf.if %25 {
      %cst_14 = arith.constant 9.99999996E-13 : f32
      %26 = vector.broadcast %cst_14 : f32 to vector<1x256xf32>
      %27 = arith.maximumf %16, %26 : vector<1x256xf32>
      %28 = math.log %27 : vector<1x256xf32>
      %cst_15 = arith.constant 9.99999996E-13 : f32
      %29 = vector.broadcast %cst_15 : f32 to vector<1x256xf32>
      %30 = arith.maximumf %17, %29 : vector<1x256xf32>
      %31 = math.log %30 : vector<1x256xf32>
      %32 = vector.broadcast %14 : f32 to vector<1x256xf32>
      %33 = arith.mulf %32, %28 : vector<1x256xf32>
      %cst_16 = arith.constant 1.000000e+00 : f32
      %34 = arith.subf %cst_16, %14 : f32
      %35 = vector.broadcast %34 : f32 to vector<1x256xf32>
      %36 = arith.mulf %35, %31 : vector<1x256xf32>
      %37 = arith.addf %33, %36 : vector<1x256xf32>
      %38 = math.exp %37 : vector<1x256xf32>
      %cst_17 = arith.constant 0.000000e+00 : f32
      %39 = vector.broadcast %cst_17 : f32 to vector<1x256xf32>
      %40 = arith.cmpf ole, %16, %39 : vector<1x256xf32>
      %cst_18 = arith.constant 0.000000e+00 : f32
      %41 = vector.broadcast %cst_18 : f32 to vector<1x256xf32>
      %42 = arith.select %40, %41, %38 : vector<1x256xi1>, vector<1x256xf32>
      %cst_19 = arith.constant 0.000000e+00 : f32
      %43 = vector.broadcast %cst_19 : f32 to vector<1x256xf32>
      %44 = arith.cmpf ole, %17, %43 : vector<1x256xf32>
      %cst_20 = arith.constant 1.000000e+00 : f32
      %45 = arith.cmpf olt, %14, %cst_20 : f32
      %46 = vector.broadcast %45 : i1 to vector<1x256xi1>
      %47 = arith.andi %44, %46 : vector<1x256xi1>
      %cst_21 = arith.constant 0.000000e+00 : f32
      %48 = vector.broadcast %cst_21 : f32 to vector<1x256xf32>
      %49 = arith.select %47, %48, %42 : vector<1x256xi1>, vector<1x256xf32>
      %c0_22 = arith.constant 0 : index
      %c0_23 = arith.constant 0 : index
      %50 = vector.load %arg3[%c0_22, %c0_23] : memref<1x256xf32, #tpu.memory_space<vmem>>, vector<1x256xf32>
      tpu.vector_store %arg3[%c0_22, %c0_23], %49 {strides = array<i32>} : memref<1x256xf32, #tpu.memory_space<vmem>>, vector<1x256xf32>,
    } else {
    }
    return
  }
}

</mosaic_0001>

<llo_original>
// kernel: _mnn_forward.3
$region0: #{_mnn_forward.3}
  #allocation0 [shape = 'u32[]', space=smem, size = 0x4, offset = 0x4, fixed_abs, tag = 'smem constant byte address 0x4 - core index']
  #allocation1 [shape = 'u32[144,128]{1,0:T(1,128)}', space=vmem, size = 0x12000, scoped, tag = 'internal scratch']
  %s0 = inlined_call_operand.vmem [shape: f32[6], index: 0, kind: input, shape index: {}]
  %s1 = inlined_call_operand.vmem [shape: f32[4,256], index: 1, kind: input, shape index: {}]
  %s2 = inlined_call_operand.hbm [shape: f32[1,256], index: 2, kind: output, shape index: {0}]
  %s3 = inlined_call_operand.hbm [shape: f32[1,256], index: 3, kind: output, shape index: {1}]
  %4 = xla_tuple %s2, %s3
  %s5 = sld [smem:[#allocation0]]
  $region38: #{_mnn_forward.3} parent=0
    _
  %s7 = ssub.s32 1, %s5
  %s8 = scalar_select 0, %s7, %s5
  $region1: #{_mnn_forward.3} parent=0
    #allocation2 [shape = 'u8[512]{0}', space=smem, size = 0x200, scoped, tag = 'input window, operand 0, single buffered']
    #allocation3 [shape = 's32[1]{0}', space=sflag, size = 0x4, scoped, tag = 'scoped memory for _mnn_forward.3']
    #allocation4 [shape = 's32[1]{0}', space=sflag, size = 0x4, scoped, tag = 'scoped memory for _mnn_forward.3']
    #allocation5 [shape = 'u8[1024]{0}', space=vmem, size = 0x400, scoped, tag = 'output window, operand 0, single buffered']
    #allocation6 [shape = 'u8[1024]{0}', space=vmem, size = 0x400, scoped, tag = 'output window, operand 1, single buffered']
    #allocation7 [shape = 's32[1]{0}', space=sflag, size = 0x4, scoped, tag = 'scoped memory for _mnn_forward.3']
    %9 = vsyncpa [#allocation4], 0
    %10 = vsyncpa [#allocation3], 0
    %11 = vsyncpa [#allocation7], 0
    // Predicated region
    $region2: #{_mnn_forward.3} parent=1 // pred_check
      _
    $region3: #{_mnn_forward.3} parent=1 // pred_check_branch
      %13 = sbr.rel (0) target = $region5
    $region4: #{_mnn_forward.3} parent=1 // pred_region
      %s15 = ssub.s32 16, 16
      %16 = vsyncadd [#allocation4], %s15
      %s18 = sshll.u32 %s0, 4
      %s19 = int_to_ptr.vmem [resolvable:$true] %s18
      %21 = dma.vmem_to_smem %s19, 16, [#allocation2], [#allocation4]
    $region5: #{_mnn_forward.3} parent=1 // pred_fallthru
      _
    // Predicated region
    $region6: #{_mnn_forward.3} parent=1 // pred_check
      _
    $region7: #{_mnn_forward.3} parent=1 // pred_check_branch
      %23 = sbr.rel (0) target = $region9
    $region8: #{_mnn_forward.3} parent=1 // pred_region
      _
    $region9: #{_mnn_forward.3} parent=1 // pred_fallthru
      _
    // Predicated region
    $region10: #{_mnn_forward.3} parent=1 // pred_check
      _
    $region11: #{_mnn_forward.3} parent=1 // pred_check_branch
      %25 = sbr.rel (0) target = $region13
    $region12: #{_mnn_forward.3} parent=1 // pred_region
      %26 = dma.done [#allocation4], 16
    $region13: #{_mnn_forward.3} parent=1 // pred_fallthru
      _
    %27 = sfence
    %s28 = sld [smem:[#allocation2]]
    %s29 = sld [smem:[#allocation2 + $0x1]]
    %s30 = sld [smem:[#allocation2 + $0x2]]
    %v31 = vld [vmem:[%s1] ss:$4 sm:$0x3]
    %s32 = scalar_lea.vmem %s1, 2
    %v33 = vld [vmem:[%s32] ss:$4 sm:$0x3]
    %v34 = vsub.f32 %v31, %v33
    %v35 = vstv %s28
    %v36 = vmul.f32 %v35, %v34
    %v37 = vadd.f32 %v33, %v36
    %v38 = vlaneseq
    %vm39 = vcmp.ge.s32.totalorder %v38, 0
    %vm40 = vcmp.lt.s32.totalorder %v38, 256
    %vm41 = vmand %vm39, %vm40
    %42 = vst.msk [vmem:[#allocation5] sm:$0x3] %vm41, %v37
    %p43 = scmp.gt.f32.partialorder %s30, 0.5
    // Predicated region
    $region14: #{_mnn_forward.3} parent=1 // pred_check
      %p44 = pneg %p43
    $region15: #{_mnn_forward.3} parent=1 // pred_check_branch
      %46 = sbr.rel (%p44) target = $region17
    $region16: #{_mnn_forward.3} parent=1 // pred_region
      %v47 = vmax.f32 %v31, 1e-12
      %v48 = vlog2.pop %v47
      %v49 = vmul.f32 %v48, 0.6931472
      %v50 = vmax.f32 %v33, 1e-12
      %v51 = vlog2.pop %v50
      %v52 = vmul.f32 %v51, 0.6931472
      %v53 = vstv %s29
      %v54 = vmul.f32 %v53, %v49
      %s55 = ssub.f32 1.0, %s29
      %v56 = vstv %s55
      %v57 = vmul.f32 %v56, %v52
      %v58 = vadd.f32 %v54, %v57
      %v59 = vmul.f32 %v58, 1.442695
      %v60 = vpow.pop %v59
      %vm61 = vcmp.le.f32.partialorder %v31, 0.0
      %v62 = vsel %vm61, 0.0, %v60
      %vm63 = vcmp.le.f32.partialorder %v33, 0.0
      %p64 = scmp.lt.f32.partialorder %s29, 1.0
      %s65 = scalar_select %p64, 1, 0
      %v66 = vstv %s65
      %vm67 = vcmp.eq.s32.totalorder %v66, 1
      %vm68 = vmand %vm63, %vm67
      %v69 = vsel %vm68, 0.0, %v62
      %70 = vst.msk [vmem:[#allocation5] sm:$0x3] %vm41, %v69
    $region17: #{_mnn_forward.3} parent=1 // pred_fallthru
      _
    %s71 = sld [smem:[#allocation2 + $0x3]]
    %s72 = sld [smem:[#allocation2 + $0x4]]
    %s73 = sld [smem:[#allocation2 + $0x5]]
    %s74 = scalar_lea.vmem %s1, 1
    %v75 = vld [vmem:[%s74] ss:$4 sm:$0x3]
    %s76 = scalar_lea.vmem %s1, 3
    %v77 = vld [vmem:[%s76] ss:$4 sm:$0x3]
    %v78 = vsub.f32 %v75, %v77
    %v79 = vstv %s71
    %v80 = vmul.f32 %v79, %v78
    %v81 = vadd.f32 %v77, %v80
    %82 = vst.msk [vmem:[#allocation6] sm:$0x3] %vm41, %v81
    %p83 = scmp.gt.f32.partialorder %s73, 0.5
    // Predicated region
    $region18: #{_mnn_forward.3} parent=1 // pred_check
      %p84 = pneg %p83
    $region19: #{_mnn_forward.3} parent=1 // pred_check_branch
      %86 = sbr.rel (%p84) target = $region21
    $region20: #{_mnn_forward.3} parent=1 // pred_region
      %v87 = vmax.f32 %v75, 1e-12
      %v88 = vlog2.pop %v87
      %v89 = vmul.f32 %v88, 0.6931472
      %v90 = vmax.f32 %v77, 1e-12
      %v91 = vlog2.pop %v90
      %v92 = vmul.f32 %v91, 0.6931472
      %v93 = vstv %s72
      %v94 = vmul.f32 %v93, %v89
      %s95 = ssub.f32 1.0, %s72
      %v96 = vstv %s95
      %v97 = vmul.f32 %v96, %v92
      %v98 = vadd.f32 %v94, %v97
      %v99 = vmul.f32 %v98, 1.442695
      %v100 = vpow.pop %v99
      %vm101 = vcmp.le.f32.partialorder %v75, 0.0
      %v102 = vsel %vm101, 0.0, %v100
      %vm103 = vcmp.le.f32.partialorder %v77, 0.0
      %p104 = scmp.lt.f32.partialorder %s72, 1.0
      %s105 = scalar_select %p104, 1, 0
      %v106 = vstv %s105
      %vm107 = vcmp.eq.s32.totalorder %v106, 1
      %vm108 = vmand %vm103, %vm107
      %v109 = vsel %vm108, 0.0, %v102
      %110 = vst.msk [vmem:[#allocation6] sm:$0x3] %vm41, %v109
    $region21: #{_mnn_forward.3} parent=1 // pred_fallthru
      _
    // Predicated region
    $region22: #{_mnn_forward.3} parent=1 // pred_check
      _
    $region23: #{_mnn_forward.3} parent=1 // pred_check_branch
      %112 = sbr.rel (0) target = $region25
    $region24: #{_mnn_forward.3} parent=1 // pred_region
      %s114 = ssub.s32 32, 32
      %115 = vsyncadd [#allocation3], %s114
      %s117 = sshll.u32 [#allocation5], 4
      %s118 = int_to_ptr.vmem [resolvable:$true] %s117
      %120 = dma.vmem_to_hbm [thread:$0]  %s118, 32, %s2, [#allocation3]
    $region25: #{_mnn_forward.3} parent=1 // pred_fallthru
      _
    // Predicated region
    $region26: #{_mnn_forward.3} parent=1 // pred_check
      _
    $region27: #{_mnn_forward.3} parent=1 // pred_check_branch
      %122 = sbr.rel (0) target = $region29
    $region28: #{_mnn_forward.3} parent=1 // pred_region
      %s124 = ssub.s32 32, 32
      %125 = vsyncadd [#allocation7], %s124
      %s127 = sshll.u32 [#allocation6], 4
      %s128 = int_to_ptr.vmem [resolvable:$true] %s127
      %130 = dma.vmem_to_hbm [thread:$0]  %s128, 32, %s3, [#allocation7]
    $region29: #{_mnn_forward.3} parent=1 // pred_fallthru
      _
    // Predicated region
    $region30: #{_mnn_forward.3} parent=1 // pred_check
      _
    $region31: #{_mnn_forward.3} parent=1 // pred_check_branch
      %132 = sbr.rel (0) target = $region33
    $region32: #{_mnn_forward.3} parent=1 // pred_region
      %133 = dma.done [#allocation3], 32
    $region33: #{_mnn_forward.3} parent=1 // pred_fallthru
      _
    // Predicated region
    $region34: #{_mnn_forward.3} parent=1 // pred_check
      _
    $region35: #{_mnn_forward.3} parent=1 // pred_check_branch
      %135 = sbr.rel (0) target = $region37
    $region36: #{_mnn_forward.3} parent=1 // pred_region
      %136 = dma.done [#allocation7], 32
    $region37: #{_mnn_forward.3} parent=1 // pred_fallthru
      _
    %137 = vsyncpa [#allocation3], 1
    %138 = vsyncpa [#allocation7], 1
    %139 = vsyncpa [#allocation4], 1

</llo_original>
